<compile_context>
chip_gen: v6e
topology: v6e:2x2x1
jax: 0.10.0
libtpu: 0.0.40
codegen_flags: <defaults>
</compile_context>

<pallas_src>
import functools
from math import sqrt

import jax
import jax.numpy as jnp
from jax.experimental import pallas as pl
from jax.experimental.pallas import tpu as pltpu


# ------------------------- fused Pallas kernel -------------------------

def _fused_kernel(xi_ref, yi_ref, emb_ref, wconv_ref, bconv_ref,
                  wabs_ref, wmul_ref, bfc_ref, out_ref,
                  *, Ks, Co, L, V, tile_b):
    """Embedding gather + all conv branches + pooling + head for one batch tile."""
    N = tile_b * L

    # ---- embedding gather (x and y stacked) as a single one-hot MXU matmul ----
    ids = jnp.concatenate([xi_ref[...], yi_ref[...]], axis=0)            # [2N, 1] i32
    onehot = (jax.lax.broadcasted_iota(jnp.int32, (2 * N, V), 1) == ids
              ).astype(jnp.float32)                                      # [2N, V]
    emb = jnp.dot(onehot, emb_ref[...],
                  preferred_element_type=jnp.float32)                    # [2N, D]

    # ---- all conv branches / kernel rows in ONE matmul ----
    proj = jnp.dot(emb, wconv_ref[...],
                   preferred_element_type=jnp.float32)                   # [2N, sum_K K*Co]
    proj = proj.reshape(2 * tile_b, L, proj.shape[-1])                   # [2B', L, C_total]

    bconv = bconv_ref[...]                                               # [1, F]
    wabs = wabs_ref[...]                                                 # [1, F]
    wmul = wmul_ref[...]                                                 # [1, F]

    acc = jnp.zeros((tile_b, 1), jnp.float32)
    col = 0   # column offset into proj / packed conv weights
    fo = 0    # feature offset into bconv / wabs / wmul
    for K in Ks:
        T = L - K + 1
        # shifted add over the K kernel rows (no per-window unfold / concat)
        conv = proj[:, 0:T, col:col + Co]
        for k in range(1, K):
            conv = conv + proj[:, k:k + T, col + k * Co:col + (k + 1) * Co]
        pooled = jnp.max(conv, axis=1)                                   # [2B', Co]
        # bias + ReLU hoisted out of the time max (ReLU monotone, b t-invariant)
        pooled = jnp.maximum(pooled + bconv[:, fo:fo + Co], 0.0)
        fx = pooled[:tile_b]
        fy = pooled[tile_b:]
        # head contribution of this branch: VPU mul + lane reduce
        # (no [|x-y|, x*y] concat, no N=1 MXU matmul)
        acc = acc + jnp.sum(jnp.abs(fx - fy) * wabs[:, fo:fo + Co],
                            axis=-1, keepdims=True)
        acc = acc + jnp.sum((fx * fy) * wmul[:, fo:fo + Co],
                            axis=-1, keepdims=True)
        col += K * Co
        fo += Co

    out_ref[...] = jax.nn.sigmoid(acc + bfc_ref[...]).astype(out_ref.dtype)


# ------------------------- wrappers -------------------------

def _pack_params(params, Ks):
    """Pack module-layout parameters into the kernel-friendly fused layout."""
    E = params["embed"]                          # [V, D]
    D = E.shape[1]
    Co = params["convs"][Ks[0]][0].shape[0]
    w_blocks, b_blocks = [], []
    for K in Ks:
        w, b = params["convs"][K]                # [Co, K, D], [Co]
        # w_all[d, k*Co + c] = w[c, k, d]
        w_blocks.append(jnp.transpose(w, (2, 1, 0)).reshape(D, K * Co))
        b_blocks.append(b.reshape(1, Co))
    w_all = jnp.concatenate(w_blocks, axis=1)    # [D, sum_K K*Co]
    b_all = jnp.concatenate(b_blocks, axis=1)    # [1, len(Ks)*Co]
    F = len(Ks) * Co
    fc_w = params["fc1_w"]                       # [2F, 1]
    w_abs = fc_w[:F, 0].reshape(1, F)            # rows multiplying |x - y|
    w_mul = fc_w[F:, 0].reshape(1, F)            # rows multiplying x * y
    b_fc = params["fc1_b"].reshape(1, 1)
    return E, w_all, b_all, w_abs, w_mul, b_fc


def cnn_text_forward(x_ids, y_ids, params, kernel_sizes, *, tile_b=None):
    Ks = tuple(kernel_sizes)
    B, L = x_ids.shape
    V, D = params["embed"].shape
    Co = params["convs"][Ks[0]][0].shape[0]
    assert L >= max(Ks), "sequence shorter than the largest conv kernel"

    if tile_b is None:
        tile_b = B                   # toy sizes: one grid step; tile for large B
    assert B % tile_b == 0

    E, w_all, b_all, w_abs, w_mul, b_fc = _pack_params(params, Ks)
    C_total = w_all.shape[1]
    F = len(Ks) * Co

    # ids are pre-flattened to a [B*L, 1] column so the kernel never reshapes
    # across lanes.
    xi = x_ids.reshape(B * L, 1).astype(jnp.int32)
    yi = y_ids.reshape(B * L, 1).astype(jnp.int32)

    grid = (B // tile_b,)
    full = lambda shape: pl.BlockSpec(shape, lambda i: (0,) * len(shape))
    kernel = functools.partial(_fused_kernel, Ks=Ks, Co=Co, L=L, V=V,
                               tile_b=tile_b)

    return pl.pallas_call(
        kernel,
        out_shape=jax.ShapeDtypeStruct((B, 1), jnp.float32),
        grid=grid,
        in_specs=[
            pl.BlockSpec((tile_b * L, 1), lambda i: (i, 0)),   # x ids (batch tile)
            pl.BlockSpec((tile_b * L, 1), lambda i: (i, 0)),   # y ids (batch tile)
            full((V, D)),                                      # embedding table
            full((D, C_total)),                                # packed conv weights
            full((1, F)),                                      # conv biases
            full((1, F)),                                      # fc1 rows for |x-y|
            full((1, F)),                                      # fc1 rows for x*y
            full((1, 1)),                                      # fc1 bias
        ],
        out_specs=pl.BlockSpec((tile_b, 1), lambda i: (i, 0)),
        compiler_params=pltpu.CompilerParams(
            dimension_semantics=("parallel",)),
    )(xi, yi, E, w_all, b_all, w_abs, w_mul, b_fc)


# ------------------------- pure-JAX reference (for verification) -------------------------

def reference_forward(x_ids, y_ids, params, kernel_sizes):
    Ks = tuple(kernel_sizes)
    E = params["embed"]

    def feats(ids):
        e = jnp.take(E, ids, axis=0)                      # [B, L, D]
        B, L, _ = e.shape
        outs = []
        for K in Ks:
            w, b = params["convs"][K]                     # [Co, K, D], [Co]
            T = L - K + 1
            wins = jnp.stack([e[:, t:t + K, :] for t in range(T)], axis=1)  # [B,T,K,D]
            s = jnp.einsum("btkd,ckd->btc", wins, w) + b
            s = jnp.maximum(s, 0.0)                       # ReLU
            outs.append(s.max(axis=1))                    # max-pool over time
        return jnp.concatenate(outs, axis=1)

    fx, fy = feats(x_ids), feats(y_ids)
    comp = jnp.concatenate([jnp.abs(fx - fy), fx * fy], axis=1)
    return jax.nn.sigmoid(comp @ params["fc1_w"] + params["fc1_b"])


# ------------------------- main -------------------------

if __name__ == "__main__":
    # args (synthetic, small): embed_num=32, embed_dim=32, kernel_num=8,
    # kernel_sizes=(3, 4, 5), static=False
    V, D, Co = 32, 32, 8
    Ks = (3, 4, 5)
    B, L = 2, 8

    key = jax.random.PRNGKey(0)
    k_emb, k_conv, k_fc, k_ids = jax.random.split(key, 4)

    # nn.Embedding(V, D): N(0, 1) init
    embed = jax.random.normal(k_emb, (V, D), jnp.float32)

    # nn.Conv2d(1, Co, (K, D)): PyTorch weight layout [Co, Ci=1, K, D] (Ci squeezed)
    convs = {}
    ck = k_conv
    for K in Ks:
        ck, kw, kb = jax.random.split(ck, 3)
        bound = 1.0 / sqrt(K * D)
        w = jax.random.uniform(kw, (Co, K, D), jnp.float32, -bound, bound)
        b = jax.random.uniform(kb, (Co,), jnp.float32, -bound, bound)
        convs[K] = (w, b)

    # nn.Linear(2 * len(Ks) * Co, 1): stored as [2F, 1] (y = x @ W + b), bias [1]
    F_total = len(Ks) * Co
    fcb = 1.0 / sqrt(2 * F_total)
    kfw, kfb = jax.random.split(k_fc)
    fc1_w = jax.random.uniform(kfw, (2 * F_total, 1), jnp.float32, -fcb, fcb)
    fc1_b = jax.random.uniform(kfb, (1,), jnp.float32, -fcb, fcb)

    params = {"embed": embed, "convs": convs, "fc1_w": fc1_w, "fc1_b": fc1_b}

    kx, ky = jax.random.split(k_ids)
    x_ids = jax.random.randint(kx, (B, L), 0, V, dtype=jnp.int32)
    y_ids = jax.random.randint(ky, (B, L), 0, V, dtype=jnp.int32)

    out = jax.block_until_ready(cnn_text_forward(x_ids, y_ids, params, Ks))
    ref = jax.block_until_ready(reference_forward(x_ids, y_ids, params, Ks))

    assert out.shape == (B, 1), out.shape
    assert jnp.allclose(out, ref, rtol=1e-5, atol=1e-5), (out, ref)

    print("KERNEL_OK")
</pallas_src>

<mosaic_0001>
module attributes {stable_mosaic.version = 11 : i64} {
  func.func @_fused_kernel(%arg0: i32, %arg1: memref<16x1xi32, #tpu.memory_space<vmem>>, %arg2: memref<16x1xi32, #tpu.memory_space<vmem>>, %arg3: memref<32x32xf32, #tpu.memory_space<vmem>>, %arg4: memref<32x96xf32, #tpu.memory_space<vmem>>, %arg5: memref<1x24xf32, #tpu.memory_space<vmem>>, %arg6: memref<1x24xf32, #tpu.memory_space<vmem>>, %arg7: memref<1x24xf32, #tpu.memory_space<vmem>>, %arg8: memref<1x1xf32, #tpu.memory_space<vmem>>, %arg9: memref<2x1xf32, #tpu.memory_space<vmem>>) attributes {dimension_semantics = [#tpu.dimension_semantics<parallel>], iteration_bounds = array<i64: 1>, scalar_prefetch = 0 : i64, scratch_operands = 0 : i64, tpu.core_type = #tpu.core_type<tc>, window_params = [{transform_indices = @transform_0, window_bounds = array<i64: 16, 1>}, {transform_indices = @transform_1, window_bounds = array<i64: 16, 1>}, {pipeline_mode = #tpu.pipeline_mode<synchronous>, transform_indices = @transform_2, window_bounds = array<i64: 32, 32>}, {pipeline_mode = #tpu.pipeline_mode<synchronous>, transform_indices = @transform_3, window_bounds = array<i64: 32, 96>}, {pipeline_mode = #tpu.pipeline_mode<synchronous>, transform_indices = @transform_4, window_bounds = array<i64: 1, 24>}, {pipeline_mode = #tpu.pipeline_mode<synchronous>, transform_indices = @transform_5, window_bounds = array<i64: 1, 24>}, {pipeline_mode = #tpu.pipeline_mode<synchronous>, transform_indices = @transform_6, window_bounds = array<i64: 1, 24>}, {pipeline_mode = #tpu.pipeline_mode<synchronous>, transform_indices = @transform_7, window_bounds = array<i64: 1, 1>}, {transform_indices = @transform_8, window_bounds = array<i64: 2, 1>}]} {
    %c0 = arith.constant 0 : index
    %c0_0 = arith.constant 0 : index
    %0 = vector.load %arg1[%c0, %c0_0] : memref<16x1xi32, #tpu.memory_space<vmem>>, vector<16x1xi32>
    %c0_1 = arith.constant 0 : index
    %c0_2 = arith.constant 0 : index
    %1 = vector.load %arg2[%c0_1, %c0_2] : memref<16x1xi32, #tpu.memory_space<vmem>>, vector<16x1xi32>
    %2 = tpu.concatenate %0, %1 in 0 : vector<16x1xi32>, vector<16x1xi32> -> vector<32x1xi32>
    %3 = tpu.iota {dimensions = array<i32: 1>} : vector<32x32xi32>
    %4 = vector.broadcast %2 : vector<32x1xi32> to vector<32x32xi32>
    %5 = arith.cmpi eq, %3, %4 : vector<32x32xi32>
    %6 = arith.extui %5 : vector<32x32xi1> to vector<32x32xi32>
    %7 = arith.sitofp %6 : vector<32x32xi32> to vector<32x32xf32>
    %c0_3 = arith.constant 0 : index
    %c0_4 = arith.constant 0 : index
    %8 = vector.load %arg3[%c0_3, %c0_4] : memref<32x32xf32, #tpu.memory_space<vmem>>, vector<32x32xf32>
    %cst = arith.constant dense<0.000000e+00> : vector<32x32xf32>
    %9 = tpu.matmul %7, %8, %cst {dimension_numbers = #tpu.dot_dimension_numbers<[1], [0], [0], [1], [0, 0, 1, 1], [], []>} : vector<32x32xf32>, vector<32x32xf32>, vector<32x32xf32> -> vector<32x32xf32>
    %c0_5 = arith.constant 0 : index
    %c0_6 = arith.constant 0 : index
    %10 = vector.load %arg4[%c0_5, %c0_6] : memref<32x96xf32, #tpu.memory_space<vmem>>, vector<32x96xf32>
    %cst_7 = arith.constant dense<0.000000e+00> : vector<32x96xf32>
    %11 = tpu.matmul %9, %10, %cst_7 {dimension_numbers = #tpu.dot_dimension_numbers<[1], [0], [0], [1], [0, 0, 1, 1], [], []>} : vector<32x32xf32>, vector<32x96xf32>, vector<32x96xf32> -> vector<32x96xf32>
    %12 = vector.shape_cast %11 : vector<32x96xf32> to vector<4x8x96xf32>
    %c0_8 = arith.constant 0 : index
    %c0_9 = arith.constant 0 : index
    %13 = vector.load %arg5[%c0_8, %c0_9] : memref<1x24xf32, #tpu.memory_space<vmem>>, vector<1x24xf32>
    %c0_10 = arith.constant 0 : index
    %c0_11 = arith.constant 0 : index
    %14 = vector.load %arg6[%c0_10, %c0_11] : memref<1x24xf32, #tpu.memory_space<vmem>>, vector<1x24xf32>
    %c0_12 = arith.constant 0 : index
    %c0_13 = arith.constant 0 : index
    %15 = vector.load %arg7[%c0_12, %c0_13] : memref<1x24xf32, #tpu.memory_space<vmem>>, vector<1x24xf32>
    %cst_14 = arith.constant 0.000000e+00 : f32
    %16 = vector.broadcast %cst_14 : f32 to vector<2x1xf32>
    %17 = vector.extract_strided_slice %12 {offsets = [0, 0, 0], sizes = [4, 6, 8], strides = [1, 1, 1]} : vector<4x8x96xf32> to vector<4x6x8xf32>
    %18 = vector.extract_strided_slice %12 {offsets = [0, 1, 8], sizes = [4, 6, 8], strides = [1, 1, 1]} : vector<4x8x96xf32> to vector<4x6x8xf32>
    %19 = arith.addf %17, %18 : vector<4x6x8xf32>
    %20 = vector.extract_strided_slice %12 {offsets = [0, 2, 16], sizes = [4, 6, 8], strides = [1, 1, 1]} : vector<4x8x96xf32> to vector<4x6x8xf32>
    %21 = arith.addf %19, %20 : vector<4x6x8xf32>
    %cst_15 = arith.constant dense<0xFF800000> : vector<4x8xf32>
    %22 = vector.multi_reduction <maximumf>, %21, %cst_15 [1] : vector<4x6x8xf32> to vector<4x8xf32>
    %23 = vector.extract_strided_slice %13 {offsets = [0, 0], sizes = [1, 8], strides = [1, 1]} : vector<1x24xf32> to vector<1x8xf32>
    %24 = vector.broadcast %23 : vector<1x8xf32> to vector<4x8xf32>
    %25 = arith.addf %22, %24 : vector<4x8xf32>
    %cst_16 = arith.constant 0.000000e+00 : f32
    %26 = vector.broadcast %cst_16 : f32 to vector<4x8xf32>
    %27 = arith.maximumf %25, %26 : vector<4x8xf32>
    %28 = vector.extract_strided_slice %27 {offsets = [0, 0], sizes = [2, 8], strides = [1, 1]} : vector<4x8xf32> to vector<2x8xf32>
    %29 = vector.extract_strided_slice %27 {offsets = [2, 0], sizes = [2, 8], strides = [1, 1]} : vector<4x8xf32> to vector<2x8xf32>
    %30 = arith.subf %28, %29 : vector<2x8xf32>
    %31 = math.absf %30 : vector<2x8xf32>
    %32 = vector.extract_strided_slice %14 {offsets = [0, 0], sizes = [1, 8], strides = [1, 1]} : vector<1x24xf32> to vector<1x8xf32>
    %33 = vector.broadcast %32 : vector<1x8xf32> to vector<2x8xf32>
    %34 = arith.mulf %31, %33 : vector<2x8xf32>
    %cst_17 = arith.constant dense<0.000000e+00> : vector<2xf32>
    %35 = vector.multi_reduction <add>, %34, %cst_17 [1] : vector<2x8xf32> to vector<2xf32>
    %36 = vector.shape_cast %35 : vector<2xf32> to vector<2x1xf32>
    %37 = arith.addf %16, %36 : vector<2x1xf32>
    %38 = arith.mulf %28, %29 : vector<2x8xf32>
    %39 = vector.extract_strided_slice %15 {offsets = [0, 0], sizes = [1, 8], strides = [1, 1]} : vector<1x24xf32> to vector<1x8xf32>
    %40 = vector.broadcast %39 : vector<1x8xf32> to vector<2x8xf32>
    %41 = arith.mulf %38, %40 : vector<2x8xf32>
    %cst_18 = arith.constant dense<0.000000e+00> : vector<2xf32>
    %42 = vector.multi_reduction <add>, %41, %cst_18 [1] : vector<2x8xf32> to vector<2xf32>
    %43 = vector.shape_cast %42 : vector<2xf32> to vector<2x1xf32>
    %44 = arith.addf %37, %43 : vector<2x1xf32>
    %45 = vector.extract_strided_slice %12 {offsets = [0, 0, 24], sizes = [4, 5, 8], strides = [1, 1, 1]} : vector<4x8x96xf32> to vector<4x5x8xf32>
    %46 = vector.extract_strided_slice %12 {offsets = [0, 1, 32], sizes = [4, 5, 8], strides = [1, 1, 1]} : vector<4x8x96xf32> to vector<4x5x8xf32>
    %47 = arith.addf %45, %46 : vector<4x5x8xf32>
    %48 = vector.extract_strided_slice %12 {offsets = [0, 2, 40], sizes = [4, 5, 8], strides = [1, 1, 1]} : vector<4x8x96xf32> to vector<4x5x8xf32>
    %49 = arith.addf %47, %48 : vector<4x5x8xf32>
    %50 = vector.extract_strided_slice %12 {offsets = [0, 3, 48], sizes = [4, 5, 8], strides = [1, 1, 1]} : vector<4x8x96xf32> to vector<4x5x8xf32>
    %51 = arith.addf %49, %50 : vector<4x5x8xf32>
    %cst_19 = arith.constant dense<0xFF800000> : vector<4x8xf32>
    %52 = vector.multi_reduction <maximumf>, %51, %cst_19 [1] : vector<4x5x8xf32> to vector<4x8xf32>
    %53 = vector.extract_strided_slice %13 {offsets = [0, 8], sizes = [1, 8], strides = [1, 1]} : vector<1x24xf32> to vector<1x8xf32>
    %54 = vector.broadcast %53 : vector<1x8xf32> to vector<4x8xf32>
    %55 = arith.addf %52, %54 : vector<4x8xf32>
    %cst_20 = arith.constant 0.000000e+00 : f32
    %56 = vector.broadcast %cst_20 : f32 to vector<4x8xf32>
    %57 = arith.maximumf %55, %56 : vector<4x8xf32>
    %58 = vector.extract_strided_slice %57 {offsets = [0, 0], sizes = [2, 8], strides = [1, 1]} : vector<4x8xf32> to vector<2x8xf32>
    %59 = vector.extract_strided_slice %57 {offsets = [2, 0], sizes = [2, 8], strides = [1, 1]} : vector<4x8xf32> to vector<2x8xf32>
    %60 = arith.subf %58, %59 : vector<2x8xf32>
    %61 = math.absf %60 : vector<2x8xf32>
    %62 = vector.extract_strided_slice %14 {offsets = [0, 8], sizes = [1, 8], strides = [1, 1]} : vector<1x24xf32> to vector<1x8xf32>
    %63 = vector.broadcast %62 : vector<1x8xf32> to vector<2x8xf32>
    %64 = arith.mulf %61, %63 : vector<2x8xf32>
    %cst_21 = arith.constant dense<0.000000e+00> : vector<2xf32>
    %65 = vector.multi_reduction <add>, %64, %cst_21 [1] : vector<2x8xf32> to vector<2xf32>
    %66 = vector.shape_cast %65 : vector<2xf32> to vector<2x1xf32>
    %67 = arith.addf %44, %66 : vector<2x1xf32>
    %68 = arith.mulf %58, %59 : vector<2x8xf32>
    %69 = vector.extract_strided_slice %15 {offsets = [0, 8], sizes = [1, 8], strides = [1, 1]} : vector<1x24xf32> to vector<1x8xf32>
    %70 = vector.broadcast %69 : vector<1x8xf32> to vector<2x8xf32>
    %71 = arith.mulf %68, %70 : vector<2x8xf32>
    %cst_22 = arith.constant dense<0.000000e+00> : vector<2xf32>
    %72 = vector.multi_reduction <add>, %71, %cst_22 [1] : vector<2x8xf32> to vector<2xf32>
    %73 = vector.shape_cast %72 : vector<2xf32> to vector<2x1xf32>
    %74 = arith.addf %67, %73 : vector<2x1xf32>
    %75 = vector.extract_strided_slice %12 {offsets = [0, 0, 56], sizes = [4, 4, 8], strides = [1, 1, 1]} : vector<4x8x96xf32> to vector<4x4x8xf32>
    %76 = vector.extract_strided_slice %12 {offsets = [0, 1, 64], sizes = [4, 4, 8], strides = [1, 1, 1]} : vector<4x8x96xf32> to vector<4x4x8xf32>
    %77 = arith.addf %75, %76 : vector<4x4x8xf32>
    %78 = vector.extract_strided_slice %12 {offsets = [0, 2, 72], sizes = [4, 4, 8], strides = [1, 1, 1]} : vector<4x8x96xf32> to vector<4x4x8xf32>
    %79 = arith.addf %77, %78 : vector<4x4x8xf32>
    %80 = vector.extract_strided_slice %12 {offsets = [0, 3, 80], sizes = [4, 4, 8], strides = [1, 1, 1]} : vector<4x8x96xf32> to vector<4x4x8xf32>
    %81 = arith.addf %79, %80 : vector<4x4x8xf32>
    %82 = vector.extract_strided_slice %12 {offsets = [0, 4, 88], sizes = [4, 4, 8], strides = [1, 1, 1]} : vector<4x8x96xf32> to vector<4x4x8xf32>
    %83 = arith.addf %81, %82 : vector<4x4x8xf32>
    %cst_23 = arith.constant dense<0xFF800000> : vector<4x8xf32>
    %84 = vector.multi_reduction <maximumf>, %83, %cst_23 [1] : vector<4x4x8xf32> to vector<4x8xf32>
    %85 = vector.extract_strided_slice %13 {offsets = [0, 16], sizes = [1, 8], strides = [1, 1]} : vector<1x24xf32> to vector<1x8xf32>
    %86 = vector.broadcast %85 : vector<1x8xf32> to vector<4x8xf32>
    %87 = arith.addf %84, %86 : vector<4x8xf32>
    %cst_24 = arith.constant 0.000000e+00 : f32
    %88 = vector.broadcast %cst_24 : f32 to vector<4x8xf32>
    %89 = arith.maximumf %87, %88 : vector<4x8xf32>
    %90 = vector.extract_strided_slice %89 {offsets = [0, 0], sizes = [2, 8], strides = [1, 1]} : vector<4x8xf32> to vector<2x8xf32>
    %91 = vector.extract_strided_slice %89 {offsets = [2, 0], sizes = [2, 8], strides = [1, 1]} : vector<4x8xf32> to vector<2x8xf32>
    %92 = arith.subf %90, %91 : vector<2x8xf32>
    %93 = math.absf %92 : vector<2x8xf32>
    %94 = vector.extract_strided_slice %14 {offsets = [0, 16], sizes = [1, 8], strides = [1, 1]} : vector<1x24xf32> to vector<1x8xf32>
    %95 = vector.broadcast %94 : vector<1x8xf32> to vector<2x8xf32>
    %96 = arith.mulf %93, %95 : vector<2x8xf32>
    %cst_25 = arith.constant dense<0.000000e+00> : vector<2xf32>
    %97 = vector.multi_reduction <add>, %96, %cst_25 [1] : vector<2x8xf32> to vector<2xf32>
    %98 = vector.shape_cast %97 : vector<2xf32> to vector<2x1xf32>
    %99 = arith.addf %74, %98 : vector<2x1xf32>
    %100 = arith.mulf %90, %91 : vector<2x8xf32>
    %101 = vector.extract_strided_slice %15 {offsets = [0, 16], sizes = [1, 8], strides = [1, 1]} : vector<1x24xf32> to vector<1x8xf32>
    %102 = vector.broadcast %101 : vector<1x8xf32> to vector<2x8xf32>
    %103 = arith.mulf %100, %102 : vector<2x8xf32>
    %cst_26 = arith.constant dense<0.000000e+00> : vector<2xf32>
    %104 = vector.multi_reduction <add>, %103, %cst_26 [1] : vector<2x8xf32> to vector<2xf32>
    %105 = vector.shape_cast %104 : vector<2xf32> to vector<2x1xf32>
    %106 = arith.addf %99, %105 : vector<2x1xf32>
    %c0_27 = arith.constant 0 : index
    %c0_28 = arith.constant 0 : index
    %107 = vector.load %arg8[%c0_27, %c0_28] : memref<1x1xf32, #tpu.memory_space<vmem>>, vector<1x1xf32>
    %108 = vector.broadcast %107 : vector<1x1xf32> to vector<2x1xf32>
    %109 = arith.addf %106, %108 : vector<2x1xf32>
    %110 = arith.negf %109 : vector<2x1xf32>
    %111 = math.exp %110 : vector<2x1xf32>
    %cst_29 = arith.constant 1.000000e+00 : f32
    %112 = vector.broadcast %cst_29 : f32 to vector<2x1xf32>
    %113 = arith.addf %112, %111 : vector<2x1xf32>
    %114 = arith.divf %112, %113 : vector<2x1xf32>
    %c0_30 = arith.constant 0 : index
    %c0_31 = arith.constant 0 : index
    %115 = vector.load %arg9[%c0_30, %c0_31] : memref<2x1xf32, #tpu.memory_space<vmem>>, vector<2x1xf32>
    tpu.vector_store %arg9[%c0_30, %c0_31], %114 {strides = array<i32>} : memref<2x1xf32, #tpu.memory_space<vmem>>, vector<2x1xf32>,
    return
  }
  func.func @transform_0(%arg0: i32) -> (i32, i32) {
    %c0_i32 = arith.constant 0 : i32
    %c0_i32_0 = arith.constant 0 : i32
    return %arg0, %c0_i32 : i32, i32
  }
  func.func @transform_1(%arg0: i32) -> (i32, i32) {
    %c0_i32 = arith.constant 0 : i32
    %c0_i32_0 = arith.constant 0 : i32
    return %arg0, %c0_i32 : i32, i32
  }
  func.func @transform_2(%arg0: i32) -> (i32, i32) {
    %c0_i32 = arith.constant 0 : i32
    %c0_i32_0 = arith.constant 0 : i32
    %c0_i32_1 = arith.constant 0 : i32
    return %c0_i32, %c0_i32_0 : i32, i32
  }
  func.func @transform_3(%arg0: i32) -> (i32, i32) {
    %c0_i32 = arith.constant 0 : i32
    %c0_i32_0 = arith.constant 0 : i32
    %c0_i32_1 = arith.constant 0 : i32
    return %c0_i32, %c0_i32_0 : i32, i32
  }
  func.func @transform_4(%arg0: i32) -> (i32, i32) {
    %c0_i32 = arith.constant 0 : i32
    %c0_i32_0 = arith.constant 0 : i32
    %c0_i32_1 = arith.constant 0 : i32
    return %c0_i32, %c0_i32_0 : i32, i32
  }
  func.func @transform_5(%arg0: i32) -> (i32, i32) {
    %c0_i32 = arith.constant 0 : i32
    %c0_i32_0 = arith.constant 0 : i32
    %c0_i32_1 = arith.constant 0 : i32
    return %c0_i32, %c0_i32_0 : i32, i32
  }
  func.func @transform_6(%arg0: i32) -> (i32, i32) {
    %c0_i32 = arith.constant 0 : i32
    %c0_i32_0 = arith.constant 0 : i32
    %c0_i32_1 = arith.constant 0 : i32
    return %c0_i32, %c0_i32_0 : i32, i32
  }
  func.func @transform_7(%arg0: i32) -> (i32, i32) {
    %c0_i32 = arith.constant 0 : i32
    %c0_i32_0 = arith.constant 0 : i32
    %c0_i32_1 = arith.constant 0 : i32
    return %c0_i32, %c0_i32_0 : i32, i32
  }
  func.func @transform_8(%arg0: i32) -> (i32, i32) {
    %c0_i32 = arith.constant 0 : i32
    %c0_i32_0 = arith.constant 0 : i32
    return %arg0, %c0_i32 : i32, i32
  }
}

</mosaic_0001>

<llo_original>
// kernel: tpu_custom_call.1
$region0: #{tpu_custom_call.1}
  #allocation0 [shape = 'u32[]', space=smem, size = 0x4, offset = 0x4, fixed_abs, tag = 'smem constant byte address 0x4 - core index']
  #allocation1 [shape = 'u32[144,128]{1,0:T(1,128)}', space=vmem, size = 0x12000, scoped, tag = 'internal scratch']
  #allocation2 [shape = 'f32[1,1]{1,0:T(1,128)S(1)}', space=vmem, size = 0x200, scoped, tag = 'scoped memory for tpu_custom_call.1']
  %s0 = inlined_call_operand.vmem [shape: s32[16,1], index: 0, kind: input, shape index: {}]
  %s1 = inlined_call_operand.vmem [shape: s32[16,1], index: 1, kind: input, shape index: {}]
  %s2 = inlined_call_operand.vmem [shape: f32[32,32], index: 2, kind: input, shape index: {}]
  %s3 = inlined_call_operand.hbm [shape: f32[32,96], index: 3, kind: input, shape index: {}]
  %s4 = inlined_call_operand.vmem [shape: f32[1,24], index: 4, kind: input, shape index: {}]
  %s5 = inlined_call_operand.vmem [shape: f32[1,24], index: 5, kind: input, shape index: {}]
  %s6 = inlined_call_operand.vmem [shape: f32[1,24], index: 6, kind: input, shape index: {}]
  %s7 = inlined_call_operand.<no memory space> [shape: f32[1,1], index: 7, kind: input, shape index: {}]
  %s8 = inlined_call_operand.vmem [shape: f32[2,1], index: 8, kind: output, shape index: {}]
  %s9 = sld [smem:[#allocation0]]
  $region46: #{tpu_custom_call.1} parent=0
    _
  %s11 = ssub.s32 1, %s9
  %s12 = scalar_select 0, %s11, %s9
  %v13 = vstv %s7
  %14 = vst [vmem:[#allocation2] sm:$0x1] %v13
  $region1: #{tpu_custom_call.1} parent=0
    #allocation3 [shape = 'u8[16384]{0}', space=vmem, size = 0x4000, scoped, tag = 'input window, operand 3, single buffered']
    #allocation4 [shape = 's32[1]{0}', space=sflag, size = 0x4, scoped, tag = 'scoped memory for tpu_custom_call.1']
    %15 = vsyncpa [#allocation4], 0
    // Predicated region
    $region2: #{tpu_custom_call.1} parent=1 // pred_check
      _
    $region3: #{tpu_custom_call.1} parent=1 // pred_check_branch
      %17 = sbr.rel (0) target = $region5
    $region4: #{tpu_custom_call.1} parent=1 // pred_region
      _
    $region5: #{tpu_custom_call.1} parent=1 // pred_fallthru
      _
    // Predicated region
    $region6: #{tpu_custom_call.1} parent=1 // pred_check
      _
    $region7: #{tpu_custom_call.1} parent=1 // pred_check_branch
      %19 = sbr.rel (0) target = $region9
    $region8: #{tpu_custom_call.1} parent=1 // pred_region
      _
    $region9: #{tpu_custom_call.1} parent=1 // pred_fallthru
      _
    // Predicated region
    $region10: #{tpu_custom_call.1} parent=1 // pred_check
      _
    $region11: #{tpu_custom_call.1} parent=1 // pred_check_branch
      %21 = sbr.rel (0) target = $region13
    $region12: #{tpu_custom_call.1} parent=1 // pred_region
      _
    $region13: #{tpu_custom_call.1} parent=1 // pred_fallthru
      _
    // Predicated region
    $region14: #{tpu_custom_call.1} parent=1 // pred_check
      _
    $region15: #{tpu_custom_call.1} parent=1 // pred_check_branch
      %23 = sbr.rel (0) target = $region17
    $region16: #{tpu_custom_call.1} parent=1 // pred_region
      %s25 = ssub.s32 512, 512
      %26 = vsyncadd [#allocation4], %s25
      %s27 = sshll.u32 [#allocation3], 4
      %s28 = int_to_ptr.vmem [resolvable:$true] %s27
      %33 = dma.hbm_to_vmem [thread:$0]  %s3, 512, %s28, [#allocation4], 128, 128, 8
    $region17: #{tpu_custom_call.1} parent=1 // pred_fallthru
      _
    // Predicated region
    $region18: #{tpu_custom_call.1} parent=1 // pred_check
      _
    $region19: #{tpu_custom_call.1} parent=1 // pred_check_branch
      %35 = sbr.rel (0) target = $region21
    $region20: #{tpu_custom_call.1} parent=1 // pred_region
      _
    $region21: #{tpu_custom_call.1} parent=1 // pred_fallthru
      _
    // Predicated region
    $region22: #{tpu_custom_call.1} parent=1 // pred_check
      _
    $region23: #{tpu_custom_call.1} parent=1 // pred_check_branch
      %37 = sbr.rel (0) target = $region25
    $region24: #{tpu_custom_call.1} parent=1 // pred_region
      _
    $region25: #{tpu_custom_call.1} parent=1 // pred_fallthru
      _
    // Predicated region
    $region26: #{tpu_custom_call.1} parent=1 // pred_check
      _
    $region27: #{tpu_custom_call.1} parent=1 // pred_check_branch
      %39 = sbr.rel (0) target = $region29
    $region28: #{tpu_custom_call.1} parent=1 // pred_region
      _
    $region29: #{tpu_custom_call.1} parent=1 // pred_fallthru
      _
    // Predicated region
    $region30: #{tpu_custom_call.1} parent=1 // pred_check
      _
    $region31: #{tpu_custom_call.1} parent=1 // pred_check_branch
      %41 = sbr.rel (0) target = $region33
    $region32: #{tpu_custom_call.1} parent=1 // pred_region
      _
    $region33: #{tpu_custom_call.1} parent=1 // pred_fallthru
      _
    // Predicated region
    $region34: #{tpu_custom_call.1} parent=1 // pred_check
      _
    $region35: #{tpu_custom_call.1} parent=1 // pred_check_branch
      %43 = sbr.rel (0) target = $region37
    $region36: #{tpu_custom_call.1} parent=1 // pred_region
      %44 = dma.done [#allocation4], 512
    $region37: #{tpu_custom_call.1} parent=1 // pred_fallthru
      _
    %v45 = vld [vmem:[%s0] sm:$0xff]
    %v46 = vld [vmem:[%s0 + $0x8] sm:$0xff]
    %v47 = vld [vmem:[%s1] sm:$0xff]
    %v48 = vld [vmem:[%s1 + $0x8] sm:$0xff]
    %v49 = vlaneseq
    %v50 = vand.u32 %v49, 127
    %51 = vset.pattern.permute.xlu0 0
    %52 = vperm.xlu0 %51, %v45
    %v53 = vpop.permute.xlu0 %52
    %54 = vset.pattern.permute.xlu0 0
    %55 = vperm.xlu0 %54, %v46
    %v56 = vpop.permute.xlu0 %55
    %57 = vset.pattern.permute.xlu0 0
    %58 = vperm.xlu0 %57, %v47
    %v59 = vpop.permute.xlu0 %58
    %60 = vset.pattern.permute.xlu0 0
    %61 = vperm.xlu0 %60, %v48
    %v62 = vpop.permute.xlu0 %61
    %vm63 = vcmp.eq.s32.totalorder %v50, %v53
    %vm64 = vcmp.eq.s32.totalorder %v50, %v56
    %vm65 = vcmp.eq.s32.totalorder %v50, %v59
    %vm66 = vcmp.eq.s32.totalorder %v50, %v62
    %v67 = vsel %vm63, 1, 0
    %v68 = vsel %vm64, 1, 0
    %v69 = vsel %vm65, 1, 0
    %v70 = vsel %vm66, 1, 0
    %v71 = vcvt.s32.f32 %v67
    %v72 = vcvt.s32.f32 %v68
    %v73 = vcvt.s32.f32 %v69
    %v74 = vcvt.s32.f32 %v70
    %v75 = vld [vmem:[%s2] sm:$0xff]
    %v76 = vld [vmem:[%s2 + $0x8] sm:$0xff]
    %v77 = vld [vmem:[%s2 + $0x10] sm:$0xff]
    %v78 = vld [vmem:[%s2 + $0x18] sm:$0xff]
    %vm79 = vcmask 261120
    %v81 = vsel %vm79, %v71, 0
    %v84 = vsel %vm79, %v72, 0
    %v87 = vsel %vm79, %v73, 0
    %v90 = vsel %vm79, %v74, 0
    %92 = vmatprep.subr.mxu0 0.0
    %93 = vmatpush1.msra.mxu0 0.0
    %94 = vmatprep.subr.mxu0 0.0
    %95 = vmatpush1.msra.mxu0 0.0
    %96 = vmatprep.subr.mxu0 0.0
    %97 = vmatpush1.msra.mxu0 0.0
    %98 = vmatprep.subr.mxu0 0.0
    %99 = vmatpush1.msra.mxu0 0.0
    %100 = vmatprep.subr.mxu0 0.0
    %101 = vmatpush1.msra.mxu0 0.0
    %102 = vmatprep.subr.mxu0 0.0
    %103 = vmatpush1.msra.mxu0 0.0
    %104 = vmatprep.subr.mxu0 0.0
    %105 = vmatpush1.msra.mxu0 0.0
    %106 = vmatprep.subr.mxu0 0.0
    %107 = vmatpush1.msra.mxu0 0.0
    %108 = vmatprep.subr.mxu0 0.0
    %109 = vmatpush1.msra.mxu0 0.0
    %110 = vmatprep.subr.mxu0 0.0
    %111 = vmatpush1.msra.mxu0 0.0
    %112 = vmatprep.subr.mxu0 0.0
    %113 = vmatpush1.msra.mxu0 0.0
    %114 = vmatprep.subr.mxu0 0.0
    %115 = vmatpush1.msra.mxu0 0.0
    %116 = vmatprep.subr.mxu0 0.0
    %117 = vmatpush1.msra.mxu0 %v78
    %118 = vmatprep.subr.mxu0 0.0
    %119 = vmatpush1.msra.mxu0 %v77
    %120 = vmatprep.subr.mxu0 0.0
    %121 = vmatpush1.msra.mxu0 %v76
    %122 = vmatprep.subr.mxu0 0.0
    %123 = vmatpush1.msra.mxu0 %v75
    %124 = vmatprep.subr.mxu0 0.0
    %125 = vmatpush2.msra.mxu0 0.0
    %126 = vmatprep.subr.mxu0 0.0
    %127 = vmatpush2.msra.mxu0 0.0
    %128 = vmatprep.subr.mxu0 0.0
    %129 = vmatpush2.msra.mxu0 0.0
    %130 = vmatprep.subr.mxu0 0.0
    %131 = vmatpush2.msra.mxu0 0.0
    %132 = vmatprep.subr.mxu0 0.0
    %133 = vmatpush2.msra.mxu0 0.0
    %134 = vmatprep.subr.mxu0 0.0
    %135 = vmatpush2.msra.mxu0 0.0
    %136 = vmatprep.subr.mxu0 0.0
    %137 = vmatpush2.msra.mxu0 0.0
    %138 = vmatprep.subr.mxu0 0.0
    %139 = vmatpush2.msra.mxu0 0.0
    %140 = vmatprep.subr.mxu0 0.0
    %141 = vmatpush2.msra.mxu0 0.0
    %142 = vmatprep.subr.mxu0 0.0
    %143 = vmatpush2.msra.mxu0 0.0
    %144 = vmatprep.subr.mxu0 0.0
    %145 = vmatpush2.msra.mxu0 0.0
    %146 = vmatprep.subr.mxu0 0.0
    %147 = vmatpush2.msra.mxu0 0.0
    %148 = vmatprep.subr.mxu0 0.0
    %149 = vmatpush2.msra.mxu0 0.0
    %150 = vmatprep.subr.mxu0 0.0
    %151 = vmatpush2.msra.mxu0 0.0
    %152 = vmatprep.subr.mxu0 0.0
    %153 = vmatpush2.msra.mxu0 0.0
    %154 = vmatprep.subr.mxu0 0.0
    %155 = vmatpush2.msra.mxu0 0.0
    %156 = vmatprep.mubr.f32.mxu0 0.0
    %157 = vmatmul.mubr.f32.gmra.mxu0 %v81
    %v158 = vpop.f32.mrf.mxu0
    %v159 = vadd.f32 0.0, %v158
    %v160 = vpop.f32.mrf.mxu0
    %161 = vmatprep.mubr.f32.mxu0 0.0
    %162 = vmatmul.mubr.f32.gmra.mxu0 %v84
    %v163 = vpop.f32.mrf.mxu0
    %v164 = vadd.f32 0.0, %v163
    %v165 = vpop.f32.mrf.mxu0
    %166 = vmatprep.mubr.f32.mxu0 0.0
    %167 = vmatmul.mubr.f32.gmra.mxu0 %v87
    %v168 = vpop.f32.mrf.mxu0
    %v169 = vadd.f32 0.0, %v168
    %v170 = vpop.f32.mrf.mxu0
    %171 = vmatprep.mubr.f32.mxu0 0.0
    %172 = vmatmul.mubr.f32.gmra.mxu0 %v90
    %v173 = vpop.f32.mrf.mxu0
    %v174 = vadd.f32 0.0, %v173
    %v175 = vpop.f32.mrf.mxu0
    %176 = vdwg.mxu0
    %v177 = vld [vmem:[#allocation3] sm:$0xff]
    %v178 = vld [vmem:[#allocation3 + $0x8] sm:$0xff]
    %v179 = vld [vmem:[#allocation3 + $0x10] sm:$0xff]
    %v180 = vld [vmem:[#allocation3 + $0x18] sm:$0xff]
    %v182 = vsel %vm79, %v159, 0
    %v185 = vsel %vm79, %v164, 0
    %v188 = vsel %vm79, %v169, 0
    %v191 = vsel %vm79, %v174, 0
    %193 = vmatprep.subr.mxu0 0.0
    %194 = vmatpush1.msra.mxu0 0.0
    %195 = vmatprep.subr.mxu0 0.0
    %196 = vmatpush1.msra.mxu0 0.0
    %197 = vmatprep.subr.mxu0 0.0
    %198 = vmatpush1.msra.mxu0 0.0
    %199 = vmatprep.subr.mxu0 0.0
    %200 = vmatpush1.msra.mxu0 0.0
    %201 = vmatprep.subr.mxu0 0.0
    %202 = vmatpush1.msra.mxu0 0.0
    %203 = vmatprep.subr.mxu0 0.0
    %204 = vmatpush1.msra.mxu0 0.0
    %205 = vmatprep.subr.mxu0 0.0
    %206 = vmatpush1.msra.mxu0 0.0
    %207 = vmatprep.subr.mxu0 0.0
    %208 = vmatpush1.msra.mxu0 0.0
    %209 = vmatprep.subr.mxu0 0.0
    %210 = vmatpush1.msra.mxu0 0.0
    %211 = vmatprep.subr.mxu0 0.0
    %212 = vmatpush1.msra.mxu0 0.0
    %213 = vmatprep.subr.mxu0 0.0
    %214 = vmatpush1.msra.mxu0 0.0
    %215 = vmatprep.subr.mxu0 0.0
    %216 = vmatpush1.msra.mxu0 0.0
    %217 = vmatprep.subr.mxu0 0.0
    %218 = vmatpush1.msra.mxu0 %v180
    %219 = vmatprep.subr.mxu0 0.0
    %220 = vmatpush1.msra.mxu0 %v179
    %221 = vmatprep.subr.mxu0 0.0
    %222 = vmatpush1.msra.mxu0 %v178
    %223 = vmatprep.subr.mxu0 0.0
    %224 = vmatpush1.msra.mxu0 %v177
    %225 = vmatprep.subr.mxu0 0.0
    %226 = vmatpush2.msra.mxu0 0.0
    %227 = vmatprep.subr.mxu0 0.0
    %228 = vmatpush2.msra.mxu0 0.0
    %229 = vmatprep.subr.mxu0 0.0
    %230 = vmatpush2.msra.mxu0 0.0
    %231 = vmatprep.subr.mxu0 0.0
    %232 = vmatpush2.msra.mxu0 0.0
    %233 = vmatprep.subr.mxu0 0.0
    %234 = vmatpush2.msra.mxu0 0.0
    %235 = vmatprep.subr.mxu0 0.0
    %236 = vmatpush2.msra.mxu0 0.0
    %237 = vmatprep.subr.mxu0 0.0
    %238 = vmatpush2.msra.mxu0 0.0
    %239 = vmatprep.subr.mxu0 0.0
    %240 = vmatpush2.msra.mxu0 0.0
    %241 = vmatprep.subr.mxu0 0.0
    %242 = vmatpush2.msra.mxu0 0.0
    %243 = vmatprep.subr.mxu0 0.0
    %244 = vmatpush2.msra.mxu0 0.0
    %245 = vmatprep.subr.mxu0 0.0
    %246 = vmatpush2.msra.mxu0 0.0
    %247 = vmatprep.subr.mxu0 0.0
    %248 = vmatpush2.msra.mxu0 0.0
    %249 = vmatprep.subr.mxu0 0.0
    %250 = vmatpush2.msra.mxu0 0.0
    %251 = vmatprep.subr.mxu0 0.0
    %252 = vmatpush2.msra.mxu0 0.0
    %253 = vmatprep.subr.mxu0 0.0
    %254 = vmatpush2.msra.mxu0 0.0
    %255 = vmatprep.subr.mxu0 0.0
    %256 = vmatpush2.msra.mxu0 0.0
    %257 = vmatprep.mubr.f32.mxu0 0.0
    %258 = vmatmul.mubr.f32.gmra.mxu0 %v182
    %v259 = vpop.f32.mrf.mxu0
    %v260 = vadd.f32 0.0, %v259
    %v261 = vpop.f32.mrf.mxu0
    %262 = vmatprep.mubr.f32.mxu0 0.0
    %263 = vmatmul.mubr.f32.gmra.mxu0 %v185
    %v264 = vpop.f32.mrf.mxu0
    %v265 = vadd.f32 0.0, %v264
    %v266 = vpop.f32.mrf.mxu0
    %267 = vmatprep.mubr.f32.mxu0 0.0
    %268 = vmatmul.mubr.f32.gmra.mxu0 %v188
    %v269 = vpop.f32.mrf.mxu0
    %v270 = vadd.f32 0.0, %v269
    %v271 = vpop.f32.mrf.mxu0
    %272 = vmatprep.mubr.f32.mxu0 0.0
    %273 = vmatmul.mubr.f32.gmra.mxu0 %v191
    %v274 = vpop.f32.mrf.mxu0
    %v275 = vadd.f32 0.0, %v274
    %v276 = vpop.f32.mrf.mxu0
    %277 = vdwg.mxu0
    %v278 = vld [vmem:[%s4] sm:$0x1]
    %v279 = vld [vmem:[%s5] sm:$0x1]
    %v280 = vld [vmem:[%s6] sm:$0x1]
    %v285 = vrot.slane %v260, 1
    %v286 = vrot.slane %v265, 1
    %v287 = vrot.slane %v270, 1
    %v288 = vrot.slane %v275, 1
    %289 = vrot.lane.b32.xlu0 %v285, 120
    %v290 = vpop.permute.xlu0 %289
    %291 = vrot.lane.b32.xlu0 %v286, 120
    %v292 = vpop.permute.xlu0 %291
    %293 = vrot.lane.b32.xlu0 %v287, 120
    %v294 = vpop.permute.xlu0 %293
    %295 = vrot.lane.b32.xlu0 %v288, 120
    %v296 = vpop.permute.xlu0 %295
    %v301 = vadd.f32 %v260, %v290
    %v302 = vadd.f32 %v265, %v292
    %v303 = vadd.f32 %v270, %v294
    %v304 = vadd.f32 %v275, %v296
    %v305 = vrot.slane %v260, 2
    %v306 = vrot.slane %v265, 2
    %v307 = vrot.slane %v270, 2
    %v308 = vrot.slane %v275, 2
    %309 = vrot.lane.b32.xlu0 %v305, 112
    %v310 = vpop.permute.xlu0 %309
    %311 = vrot.lane.b32.xlu0 %v306, 112
    %v312 = vpop.permute.xlu0 %311
    %313 = vrot.lane.b32.xlu0 %v307, 112
    %v314 = vpop.permute.xlu0 %313
    %315 = vrot.lane.b32.xlu0 %v308, 112
    %v316 = vpop.permute.xlu0 %315
    %v321 = vadd.f32 %v301, %v310
    %v322 = vadd.f32 %v302, %v312
    %v323 = vadd.f32 %v303, %v314
    %v324 = vadd.f32 %v304, %v316
    %vm325 = vcmask 62464
    %v326 = vsel %vm325, %v321, -inf
    %v327 = vrot.slane %v326, 4
    %v328 = vmax.f32 %v326, %v327
    %v329 = vrot.slane %v328, 2
    %v330 = vmax.f32 %v328, %v329
    %v331 = vrot.slane %v330, 1
    %v332 = vmax.f32 %v330, %v331
    %v333 = vsel %vm325, %v322, -inf
    %v334 = vrot.slane %v333, 4
    %v335 = vmax.f32 %v333, %v334
    %v336 = vrot.slane %v335, 2
    %v337 = vmax.f32 %v335, %v336
    %v338 = vrot.slane %v337, 1
    %v339 = vmax.f32 %v337, %v338
    %v340 = vsel %vm325, %v323, -inf
    %v341 = vrot.slane %v340, 4
    %v342 = vmax.f32 %v340, %v341
    %v343 = vrot.slane %v342, 2
    %v344 = vmax.f32 %v342, %v343
    %v345 = vrot.slane %v344, 1
    %v346 = vmax.f32 %v344, %v345
    %v347 = vsel %vm325, %v324, -inf
    %v348 = vrot.slane %v347, 4
    %v349 = vmax.f32 %v347, %v348
    %v350 = vrot.slane %v349, 2
    %v351 = vmax.f32 %v349, %v350
    %v352 = vrot.slane %v351, 1
    %v353 = vmax.f32 %v351, %v352
    %v355 = vlaneseq
    %v356 = vshrl.u32 %v355, 7
    %v357 = vsub.s32 0, %v356
    %v358 = vrot.slane %v278, %v357
    %v360 = vadd.f32 %v332, %v358
    %v361 = vadd.f32 %v339, %v358
    %v362 = vadd.f32 %v346, %v358
    %v363 = vadd.f32 %v353, %v358
    %v364 = vmax.f32 %v360, 0.0
    %v365 = vmax.f32 %v361, 0.0
    %v366 = vmax.f32 %v362, 0.0
    %v367 = vmax.f32 %v363, 0.0
    %v368 = vsub.f32 %v364, %v366
    %v369 = vsub.f32 %v365, %v367
    %v370 = vand.u32 2147483647, %v368
    %v371 = vand.u32 2147483647, %v369
    %v373 = vlaneseq
    %v374 = vshrl.u32 %v373, 7
    %v375 = vsub.s32 0, %v374
    %v376 = vrot.slane %v279, %v375
    %v378 = vmul.f32 %v370, %v376
    %v379 = vmul.f32 %v371, %v376
    %v382 = vrot.slane %v379, 7
    %vm383 = vcmask 1041409
    %v384 = vsel %vm383, %v382, %v378
    %vm386 = vcmask 58368
    %v387 = vsel %vm386, %v384, 0.0
    %388 = vadd.xlane.f32.xlu0 %v387
    %v389 = vpop.xlane.xlu0 %388
    %v390 = vadd.f32 %v389, 0.0
    %v391 = vmul.f32 %v364, %v366
    %v392 = vmul.f32 %v365, %v367
    %v394 = vlaneseq
    %v395 = vshrl.u32 %v394, 7
    %v396 = vsub.s32 0, %v395
    %v397 = vrot.slane %v280, %v396
    %v399 = vmul.f32 %v391, %v397
    %v400 = vmul.f32 %v392, %v397
    %v403 = vrot.slane %v400, 7
    %v404 = vsel %vm383, %v403, %v399
    %v406 = vsel %vm386, %v404, 0.0
    %407 = vadd.xlane.f32.xlu0 %v406
    %v408 = vpop.xlane.xlu0 %407
    %v409 = vadd.f32 %v390, %v408
    %v410 = vrot.slane %v260, 3
    %v411 = vrot.slane %v265, 3
    %v412 = vrot.slane %v270, 3
    %v413 = vrot.slane %v275, 3
    %414 = vrot.lane.b32.xlu0 %v410, 104
    %v415 = vpop.permute.xlu0 %414
    %416 = vrot.lane.b32.xlu0 %v411, 104
    %v417 = vpop.permute.xlu0 %416
    %418 = vrot.lane.b32.xlu0 %v412, 104
    %v419 = vpop.permute.xlu0 %418
    %420 = vrot.lane.b32.xlu0 %v413, 104
    %v421 = vpop.permute.xlu0 %420
    %v426 = vadd.f32 %v321, %v415
    %v427 = vadd.f32 %v322, %v417
    %v428 = vadd.f32 %v323, %v419
    %v429 = vadd.f32 %v324, %v421
    %vm430 = vcmask 258240
    %v431 = vsel %vm430, %v426, -inf
    %v432 = vrot.slane %v431, 4
    %v433 = vmax.f32 %v431, %v432
    %v434 = vrot.slane %v433, 2
    %v435 = vmax.f32 %v433, %v434
    %v436 = vrot.slane %v435, 1
    %v437 = vmax.f32 %v435, %v436
    %v438 = vsel %vm430, %v427, -inf
    %v439 = vrot.slane %v438, 4
    %v440 = vmax.f32 %v438, %v439
    %v441 = vrot.slane %v440, 2
    %v442 = vmax.f32 %v440, %v441
    %v443 = vrot.slane %v442, 1
    %v444 = vmax.f32 %v442, %v443
    %v445 = vsel %vm430, %v428, -inf
    %v446 = vrot.slane %v445, 4
    %v447 = vmax.f32 %v445, %v446
    %v448 = vrot.slane %v447, 2
    %v449 = vmax.f32 %v447, %v448
    %v450 = vrot.slane %v449, 1
    %v451 = vmax.f32 %v449, %v450
    %v452 = vsel %vm430, %v429, -inf
    %v453 = vrot.slane %v452, 4
    %v454 = vmax.f32 %v452, %v453
    %v455 = vrot.slane %v454, 2
    %v456 = vmax.f32 %v454, %v455
    %v457 = vrot.slane %v456, 1
    %v458 = vmax.f32 %v456, %v457
    %459 = vrot.lane.b32.xlu0 %v358, 16
    %v460 = vpop.permute.xlu0 %459
    %v462 = vadd.f32 %v437, %v460
    %v463 = vadd.f32 %v444, %v460
    %v464 = vadd.f32 %v451, %v460
    %v465 = vadd.f32 %v458, %v460
    %v466 = vmax.f32 %v462, 0.0
    %v467 = vmax.f32 %v463, 0.0
    %v468 = vmax.f32 %v464, 0.0
    %v469 = vmax.f32 %v465, 0.0
    %v470 = vsub.f32 %v466, %v468
    %v471 = vsub.f32 %v467, %v469
    %v472 = vand.u32 2147483647, %v470
    %v473 = vand.u32 2147483647, %v471
    %474 = vrot.lane.b32.xlu0 %v376, 16
    %v475 = vpop.permute.xlu0 %474
    %v477 = vmul.f32 %v472, %v475
    %v478 = vmul.f32 %v473, %v475
    %v481 = vrot.slane %v478, 7
    %v482 = vsel %vm383, %v481, %v477
    %483 = vrot.lane.b32.xlu0 %v482, 104
    %v484 = vpop.permute.xlu0 %483
    %v486 = vsel %vm386, %v484, 0.0
    %487 = vadd.xlane.f32.xlu0 %v486
    %v488 = vpop.xlane.xlu0 %487
    %v489 = vadd.f32 %v409, %v488
    %v490 = vmul.f32 %v466, %v468
    %v491 = vmul.f32 %v467, %v469
    %492 = vrot.lane.b32.xlu0 %v397, 16
    %v493 = vpop.permute.xlu0 %492
    %v495 = vmul.f32 %v490, %v493
    %v496 = vmul.f32 %v491, %v493
    %v499 = vrot.slane %v496, 7
    %v500 = vsel %vm383, %v499, %v495
    %501 = vrot.lane.b32.xlu0 %v500, 104
    %v502 = vpop.permute.xlu0 %501
    %v504 = vsel %vm386, %v502, 0.0
    %505 = vadd.xlane.f32.xlu0 %v504
    %v506 = vpop.xlane.xlu0 %505
    %v507 = vadd.f32 %v489, %v506
    %v508 = vrot.slane %v260, 4
    %v509 = vrot.slane %v265, 4
    %v510 = vrot.slane %v270, 4
    %v511 = vrot.slane %v275, 4
    %512 = vrot.lane.b32.xlu0 %v508, 96
    %v513 = vpop.permute.xlu0 %512
    %514 = vrot.lane.b32.xlu0 %v509, 96
    %v515 = vpop.permute.xlu0 %514
    %516 = vrot.lane.b32.xlu0 %v510, 96
    %v517 = vpop.permute.xlu0 %516
    %518 = vrot.lane.b32.xlu0 %v511, 96
    %v519 = vpop.permute.xlu0 %518
    %v524 = vadd.f32 %v426, %v513
    %v525 = vadd.f32 %v427, %v515
    %v526 = vadd.f32 %v428, %v517
    %v527 = vadd.f32 %v429, %v519
    %vm528 = vcmask 519616
    %v529 = vsel %vm528, %v524, -inf
    %v530 = vrot.slane %v529, 4
    %v531 = vmax.f32 %v529, %v530
    %v532 = vrot.slane %v531, 2
    %v533 = vmax.f32 %v531, %v532
    %v534 = vrot.slane %v533, 1
    %v535 = vmax.f32 %v533, %v534
    %v536 = vsel %vm528, %v525, -inf
    %v537 = vrot.slane %v536, 4
    %v538 = vmax.f32 %v536, %v537
    %v539 = vrot.slane %v538, 2
    %v540 = vmax.f32 %v538, %v539
    %v541 = vrot.slane %v540, 1
    %v542 = vmax.f32 %v540, %v541
    %v543 = vsel %vm528, %v526, -inf
    %v544 = vrot.slane %v543, 4
    %v545 = vmax.f32 %v543, %v544
    %v546 = vrot.slane %v545, 2
    %v547 = vmax.f32 %v545, %v546
    %v548 = vrot.slane %v547, 1
    %v549 = vmax.f32 %v547, %v548
    %v550 = vsel %vm528, %v527, -inf
    %v551 = vrot.slane %v550, 4
    %v552 = vmax.f32 %v550, %v551
    %v553 = vrot.slane %v552, 2
    %v554 = vmax.f32 %v552, %v553
    %v555 = vrot.slane %v554, 1
    %v556 = vmax.f32 %v554, %v555
    %557 = vrot.lane.b32.xlu0 %v358, 40
    %v558 = vpop.permute.xlu0 %557
    %v560 = vadd.f32 %v535, %v558
    %v561 = vadd.f32 %v542, %v558
    %v562 = vadd.f32 %v549, %v558
    %v563 = vadd.f32 %v556, %v558
    %v564 = vmax.f32 %v560, 0.0
    %v565 = vmax.f32 %v561, 0.0
    %v566 = vmax.f32 %v562, 0.0
    %v567 = vmax.f32 %v563, 0.0
    %v568 = vsub.f32 %v564, %v566
    %v569 = vsub.f32 %v565, %v567
    %v570 = vand.u32 2147483647, %v568
    %v571 = vand.u32 2147483647, %v569
    %572 = vrot.lane.b32.xlu0 %v376, 40
    %v573 = vpop.permute.xlu0 %572
    %v575 = vmul.f32 %v570, %v573
    %v576 = vmul.f32 %v571, %v573
    %v579 = vrot.slane %v576, 7
    %v580 = vsel %vm383, %v579, %v575
    %581 = vrot.lane.b32.xlu0 %v580, 72
    %v582 = vpop.permute.xlu0 %581
    %v584 = vsel %vm386, %v582, 0.0
    %585 = vadd.xlane.f32.xlu0 %v584
    %v586 = vpop.xlane.xlu0 %585
    %v587 = vadd.f32 %v507, %v586
    %v588 = vmul.f32 %v564, %v566
    %v589 = vmul.f32 %v565, %v567
    %590 = vrot.lane.b32.xlu0 %v397, 40
    %v591 = vpop.permute.xlu0 %590
    %v593 = vmul.f32 %v588, %v591
    %v594 = vmul.f32 %v589, %v591
    %v597 = vrot.slane %v594, 7
    %v598 = vsel %vm383, %v597, %v593
    %599 = vrot.lane.b32.xlu0 %v598, 72
    %v600 = vpop.permute.xlu0 %599
    %v602 = vsel %vm386, %v600, 0.0
    %603 = vadd.xlane.f32.xlu0 %v602
    %v604 = vpop.xlane.xlu0 %603
    %v605 = vadd.f32 %v587, %v604
    %v606 = vld [vmem:[#allocation2] sm:$0x1]
    %v608 = vlaneseq
    %v609 = vshrl.u32 %v608, 7
    %v610 = vsub.s32 0, %v609
    %v611 = vrot.slane %v606, %v610
    %v613 = vadd.f32 %v605, %v611
    %v614 = vxor.u32 %v613, 2147483648
    %v615 = vmul.f32 %v614, 1.442695
    %v616 = vpow.pop %v615
    %v617 = vadd.f32 %v616, 1.0
    %v618 = vrcp.pop %v617
    %v619 = vmul.f32 1.0, %v618
    %vm620 = vcmask 1024
    %621 = vst.msk [vmem:[%s8] sm:$0x3] %vm620, %v619
    // Predicated region
    $region38: #{tpu_custom_call.1} parent=1 // pred_check
      _
    $region39: #{tpu_custom_call.1} parent=1 // pred_check_branch
      %623 = sbr.rel (0) target = $region41
    $region40: #{tpu_custom_call.1} parent=1 // pred_region
      _
    $region41: #{tpu_custom_call.1} parent=1 // pred_fallthru
      _
    // Predicated region
    $region42: #{tpu_custom_call.1} parent=1 // pred_check
      _
    $region43: #{tpu_custom_call.1} parent=1 // pred_check_branch
      %625 = sbr.rel (0) target = $region45
    $region44: #{tpu_custom_call.1} parent=1 // pred_region
      _
    $region45: #{tpu_custom_call.1} parent=1 // pred_fallthru
      _
    %626 = vsyncpa [#allocation4], 1

</llo_original>
